<compile_context>
chip_gen: v7x
topology: tpu7x:2x2x1
jax: 0.10.0
libtpu: 0.0.40
codegen_flags: <defaults>
</compile_context>

<pallas_src>
import jax
import jax.numpy as jnp
from jax.experimental import pallas as pl
from jax.experimental.pallas import tpu as pltpu

HIDDEN_SIZE = 256
NUM_HEADS = 2  # q1, q2


def _critic_kernel(sa_ref, w1_ref, b1_ref, w2_ref, b2_ref, w3_ref, b3_ref,
                   out_ref):
    """Both Q heads in one invocation: ReLU(ReLU(sa@W1+b1)@W2+b2)·w3 + b3."""
    x = sa_ref[...].astype(jnp.bfloat16)                      # [B, D]

    for h in range(NUM_HEADS):                                # static unroll
        # Layer 1
        h1 = jnp.dot(x, w1_ref[h],
                     preferred_element_type=jnp.float32) + b1_ref[h]
        h1 = jnp.maximum(h1, 0.0)                             # ReLU

        # Layer 2
        h2 = jnp.dot(h1.astype(jnp.bfloat16), w2_ref[h],
                     preferred_element_type=jnp.float32) + b2_ref[h]
        h2 = jnp.maximum(h2, 0.0)                             # ReLU

        # Layer 3 as VPU multiply + cross-lane reduction (keeps N=1 off MXU).
        w3_row = w3_ref[h].astype(jnp.float32)                # [1, H]
        q = jnp.sum(h2 * w3_row, axis=-1, keepdims=True) + b3_ref[h]   # [B,1]
        out_ref[h] = q.astype(out_ref.dtype)


@jax.jit
def critic_forward(state, action, params):
    """Equivalent of Critic.forward(state, action) -> (q1, q2)."""
    B, state_dim = state.shape
    action_dim = action.shape[1]
    D = state_dim + action_dim
    H = HIDDEN_SIZE

    # Tiny [B, D] concat done once in the wrapper (single layer-1 MXU push).
    sa = jnp.concatenate([state, action], axis=1)

    flops = 2 * NUM_HEADS * B * (D * H + H * H + H)
    bytes_accessed = (
        NUM_HEADS * 2 * (D * H + H * H + H)       # bf16 weights
        + NUM_HEADS * 4 * (2 * H + 1)             # f32 biases
        + 4 * B * D                               # f32 input
        + 4 * NUM_HEADS * B)                      # f32 outputs

    vmem = lambda: pl.BlockSpec(memory_space=pltpu.MemorySpace.VMEM)
    smem = lambda: pl.BlockSpec(memory_space=pltpu.MemorySpace.SMEM)

    q = pl.pallas_call(
        _critic_kernel,
        out_shape=jax.ShapeDtypeStruct((NUM_HEADS, B, 1), jnp.float32),
        in_specs=[
            vmem(),   # sa               [B, D]
            vmem(),   # w1               [2, D, H] bf16
            vmem(),   # b1               [2, 1, H] f32
            vmem(),   # w2               [2, H, H] bf16
            vmem(),   # b2               [2, 1, H] f32
            vmem(),   # w3 (row form)    [2, 1, H] bf16
            smem(),   # b3 scalars       [2]       f32
        ],
        out_specs=vmem(),
        cost_estimate=pl.CostEstimate(
            flops=flops, transcendentals=0, bytes_accessed=bytes_accessed),
    )(sa, params["w1"], params["b1"], params["w2"], params["b2"],
      params["w3"], params["b3"])

    return q[0], q[1]


def _xavier_uniform(key, fan_in, fan_out):
    """torch.nn.init.xavier_uniform_ with gain=1, stored as [in, out]."""
    bound = float(jnp.sqrt(6.0 / (fan_in + fan_out)))
    return jax.random.uniform(key, (fan_in, fan_out), dtype=jnp.float32,
                              minval=-bound, maxval=bound)


def init_critic_params(key, state_dim, action_dim):
    """Parameter init matching Critic.__init__: xavier weights, zero biases.

    Weights are stacked over the head axis and stored as bf16; biases f32.
    """
    d = state_dim + action_dim
    keys = jax.random.split(key, 3 * NUM_HEADS)

    w1, b1, w2, b2, w3, b3 = [], [], [], [], [], []
    for h in range(NUM_HEADS):
        k1, k2, k3 = keys[3 * h], keys[3 * h + 1], keys[3 * h + 2]
        w1.append(_xavier_uniform(k1, d, HIDDEN_SIZE))
        b1.append(jnp.zeros((1, HIDDEN_SIZE), jnp.float32))
        w2.append(_xavier_uniform(k2, HIDDEN_SIZE, HIDDEN_SIZE))
        b2.append(jnp.zeros((1, HIDDEN_SIZE), jnp.float32))
        w3.append(_xavier_uniform(k3, HIDDEN_SIZE, 1).T)      # row form [1, H]
        b3.append(jnp.zeros((), jnp.float32))

    return {
        "w1": jnp.stack(w1).astype(jnp.bfloat16),   # [2, D, 256]
        "b1": jnp.stack(b1),                        # [2, 1, 256]
        "w2": jnp.stack(w2).astype(jnp.bfloat16),   # [2, 256, 256]
        "b2": jnp.stack(b2),                        # [2, 1, 256]
        "w3": jnp.stack(w3).astype(jnp.bfloat16),   # [2, 1, 256]
        "b3": jnp.stack(b3),                        # [2]
    }


def _ref_forward(state, action, params):
    """Pure-JAX reference mirroring the kernel's bf16-weight math."""
    sa = jnp.concatenate([state, action], axis=1)
    x = sa.astype(jnp.bfloat16).astype(jnp.float32)
    outs = []
    for h in range(NUM_HEADS):
        w1 = params["w1"][h].astype(jnp.float32)
        b1 = params["b1"][h]
        w2 = params["w2"][h].astype(jnp.float32)
        b2 = params["b2"][h]
        w3 = params["w3"][h].astype(jnp.float32)
        b3 = params["b3"][h]
        h1 = jnp.maximum(x @ w1 + b1, 0.0)
        h2 = jnp.maximum(h1.astype(jnp.bfloat16).astype(jnp.float32) @ w2 + b2,
                         0.0)
        outs.append(jnp.sum(h2 * w3, axis=-1, keepdims=True) + b3)
    return outs[0], outs[1]


if __name__ == "__main__":
    # CartPole-like SAC dimensions: state_dim=4, action_dim=1, batch=2.
    state_dim, action_dim, batch = 4, 1, 2

    key = jax.random.PRNGKey(0)
    k_params, k_state, k_action, k_bias = jax.random.split(key, 4)

    params = init_critic_params(k_params, state_dim, action_dim)
    state = jax.random.normal(k_state, (batch, state_dim), dtype=jnp.float32)
    action = jax.random.normal(k_action, (batch, action_dim), dtype=jnp.float32)

    # 1) Official init (zero biases, matching the PyTorch module).
    q1, q2 = critic_forward(state, action, params)
    jax.block_until_ready((q1, q2))
    assert q1.shape == (batch, 1) and q2.shape == (batch, 1)
    assert q1.dtype == jnp.float32 and q2.dtype == jnp.float32
    r1, r2 = _ref_forward(state, action, params)
    assert jnp.allclose(q1, r1, atol=1e-3, rtol=1e-3), (q1, r1)
    assert jnp.allclose(q2, r2, atol=1e-3, rtol=1e-3), (q2, r2)

    # 2) Non-zero biases (test-only) so the bias indexing/add paths are
    #    actually exercised, not just multiplied by zero.
    kb1, kb2, kb3 = jax.random.split(k_bias, 3)
    params_b = dict(params)
    params_b["b1"] = 0.1 * jax.random.normal(kb1, params["b1"].shape,
                                             dtype=jnp.float32)
    params_b["b2"] = 0.1 * jax.random.normal(kb2, params["b2"].shape,
                                             dtype=jnp.float32)
    params_b["b3"] = 0.1 * jax.random.normal(kb3, params["b3"].shape,
                                             dtype=jnp.float32)
    q1b, q2b = critic_forward(state, action, params_b)
    jax.block_until_ready((q1b, q2b))
    r1b, r2b = _ref_forward(state, action, params_b)
    assert jnp.allclose(q1b, r1b, atol=1e-3, rtol=1e-3), (q1b, r1b)
    assert jnp.allclose(q2b, r2b, atol=1e-3, rtol=1e-3), (q2b, r2b)

    print("KERNEL_OK")
</pallas_src>

<mosaic_0001>
module attributes {stable_mosaic.version = 11 : i64} {
  func.func @_critic_kernel(%arg0: memref<2x5xf32, #tpu.memory_space<vmem>>, %arg1: memref<2x5x256xbf16, #tpu.memory_space<vmem>>, %arg2: memref<2x1x256xf32, #tpu.memory_space<vmem>>, %arg3: memref<2x256x256xbf16, #tpu.memory_space<vmem>>, %arg4: memref<2x1x256xf32, #tpu.memory_space<vmem>>, %arg5: memref<2x1x256xbf16, #tpu.memory_space<vmem>>, %arg6: memref<2xf32, #tpu.memory_space<smem>>, %arg7: memref<2x2x1xf32, #tpu.memory_space<vmem>>) attributes {dimension_semantics = [], scalar_prefetch = 0 : i64, scratch_operands = 0 : i64, tpu.core_type = #tpu.core_type<tc>} {
    %c0 = arith.constant 0 : index
    %c0_0 = arith.constant 0 : index
    %0 = vector.load %arg0[%c0, %c0_0] : memref<2x5xf32, #tpu.memory_space<vmem>>, vector<2x5xf32>
    %1 = arith.truncf %0 : vector<2x5xf32> to vector<2x5xbf16>
    %c0_1 = arith.constant 0 : index
    %c0_2 = arith.constant 0 : index
    %c0_3 = arith.constant 0 : index
    %2 = vector.load %arg1[%c0_1, %c0_2, %c0_3] : memref<2x5x256xbf16, #tpu.memory_space<vmem>>, vector<1x5x256xbf16>
    %3 = vector.shape_cast %2 : vector<1x5x256xbf16> to vector<5x256xbf16>
    %cst = arith.constant dense<0.000000e+00> : vector<2x256xf32>
    %4 = tpu.matmul %1, %3, %cst {dimension_numbers = #tpu.dot_dimension_numbers<[1], [0], [0], [1], [0, 0, 1, 1], [], []>} : vector<2x5xbf16>, vector<5x256xbf16>, vector<2x256xf32> -> vector<2x256xf32>
    %c0_4 = arith.constant 0 : index
    %c0_5 = arith.constant 0 : index
    %c0_6 = arith.constant 0 : index
    %5 = vector.load %arg2[%c0_4, %c0_5, %c0_6] : memref<2x1x256xf32, #tpu.memory_space<vmem>>, vector<1x1x256xf32>
    %6 = vector.shape_cast %5 : vector<1x1x256xf32> to vector<1x256xf32>
    %7 = vector.broadcast %6 : vector<1x256xf32> to vector<2x256xf32>
    %8 = arith.addf %4, %7 : vector<2x256xf32>
    %cst_7 = arith.constant 0.000000e+00 : f32
    %9 = vector.broadcast %cst_7 : f32 to vector<2x256xf32>
    %10 = arith.maximumf %8, %9 : vector<2x256xf32>
    %11 = arith.truncf %10 : vector<2x256xf32> to vector<2x256xbf16>
    %c0_8 = arith.constant 0 : index
    %c0_9 = arith.constant 0 : index
    %c0_10 = arith.constant 0 : index
    %12 = vector.load %arg3[%c0_8, %c0_9, %c0_10] : memref<2x256x256xbf16, #tpu.memory_space<vmem>>, vector<1x256x256xbf16>
    %13 = vector.shape_cast %12 : vector<1x256x256xbf16> to vector<256x256xbf16>
    %cst_11 = arith.constant dense<0.000000e+00> : vector<2x256xf32>
    %14 = tpu.matmul %11, %13, %cst_11 {dimension_numbers = #tpu.dot_dimension_numbers<[1], [0], [0], [1], [0, 0, 1, 1], [], []>} : vector<2x256xbf16>, vector<256x256xbf16>, vector<2x256xf32> -> vector<2x256xf32>
    %c0_12 = arith.constant 0 : index
    %c0_13 = arith.constant 0 : index
    %c0_14 = arith.constant 0 : index
    %15 = vector.load %arg4[%c0_12, %c0_13, %c0_14] : memref<2x1x256xf32, #tpu.memory_space<vmem>>, vector<1x1x256xf32>
    %16 = vector.shape_cast %15 : vector<1x1x256xf32> to vector<1x256xf32>
    %17 = vector.broadcast %16 : vector<1x256xf32> to vector<2x256xf32>
    %18 = arith.addf %14, %17 : vector<2x256xf32>
    %cst_15 = arith.constant 0.000000e+00 : f32
    %19 = vector.broadcast %cst_15 : f32 to vector<2x256xf32>
    %20 = arith.maximumf %18, %19 : vector<2x256xf32>
    %c0_16 = arith.constant 0 : index
    %c0_17 = arith.constant 0 : index
    %c0_18 = arith.constant 0 : index
    %21 = vector.load %arg5[%c0_16, %c0_17, %c0_18] : memref<2x1x256xbf16, #tpu.memory_space<vmem>>, vector<1x1x256xbf16>
    %22 = vector.shape_cast %21 : vector<1x1x256xbf16> to vector<1x256xbf16>
    %23 = arith.extf %22 : vector<1x256xbf16> to vector<1x256xf32>
    %24 = vector.broadcast %23 : vector<1x256xf32> to vector<2x256xf32>
    %25 = arith.mulf %20, %24 : vector<2x256xf32>
    %cst_19 = arith.constant dense<0.000000e+00> : vector<2xf32>
    %26 = vector.multi_reduction <add>, %25, %cst_19 [1] : vector<2x256xf32> to vector<2xf32>
    %27 = vector.shape_cast %26 : vector<2xf32> to vector<2x1xf32>
    %c0_20 = arith.constant 0 : index
    %28 = memref.load %arg6[%c0_20] : memref<2xf32, #tpu.memory_space<smem>>
    %29 = vector.broadcast %28 : f32 to vector<2x1xf32>
    %30 = arith.addf %27, %29 : vector<2x1xf32>
    %c0_21 = arith.constant 0 : index
    %c0_22 = arith.constant 0 : index
    %c0_23 = arith.constant 0 : index
    %31 = vector.load %arg7[%c0_21, %c0_22, %c0_23] : memref<2x2x1xf32, #tpu.memory_space<vmem>>, vector<1x2x1xf32>
    %32 = vector.shape_cast %31 : vector<1x2x1xf32> to vector<2x1xf32>
    %33 = vector.shape_cast %30 : vector<2x1xf32> to vector<1x2x1xf32>
    tpu.vector_store %arg7[%c0_21, %c0_22, %c0_23], %33 {strides = array<i32>} : memref<2x2x1xf32, #tpu.memory_space<vmem>>, vector<1x2x1xf32>,
    %c1 = arith.constant 1 : index
    %c0_24 = arith.constant 0 : index
    %c0_25 = arith.constant 0 : index
    %34 = vector.load %arg1[%c1, %c0_24, %c0_25] : memref<2x5x256xbf16, #tpu.memory_space<vmem>>, vector<1x5x256xbf16>
    %35 = vector.shape_cast %34 : vector<1x5x256xbf16> to vector<5x256xbf16>
    %cst_26 = arith.constant dense<0.000000e+00> : vector<2x256xf32>
    %36 = tpu.matmul %1, %35, %cst_26 {dimension_numbers = #tpu.dot_dimension_numbers<[1], [0], [0], [1], [0, 0, 1, 1], [], []>} : vector<2x5xbf16>, vector<5x256xbf16>, vector<2x256xf32> -> vector<2x256xf32>
    %c1_27 = arith.constant 1 : index
    %c0_28 = arith.constant 0 : index
    %c0_29 = arith.constant 0 : index
    %37 = vector.load %arg2[%c1_27, %c0_28, %c0_29] : memref<2x1x256xf32, #tpu.memory_space<vmem>>, vector<1x1x256xf32>
    %38 = vector.shape_cast %37 : vector<1x1x256xf32> to vector<1x256xf32>
    %39 = vector.broadcast %38 : vector<1x256xf32> to vector<2x256xf32>
    %40 = arith.addf %36, %39 : vector<2x256xf32>
    %cst_30 = arith.constant 0.000000e+00 : f32
    %41 = vector.broadcast %cst_30 : f32 to vector<2x256xf32>
    %42 = arith.maximumf %40, %41 : vector<2x256xf32>
    %43 = arith.truncf %42 : vector<2x256xf32> to vector<2x256xbf16>
    %c1_31 = arith.constant 1 : index
    %c0_32 = arith.constant 0 : index
    %c0_33 = arith.constant 0 : index
    %44 = vector.load %arg3[%c1_31, %c0_32, %c0_33] : memref<2x256x256xbf16, #tpu.memory_space<vmem>>, vector<1x256x256xbf16>
    %45 = vector.shape_cast %44 : vector<1x256x256xbf16> to vector<256x256xbf16>
    %cst_34 = arith.constant dense<0.000000e+00> : vector<2x256xf32>
    %46 = tpu.matmul %43, %45, %cst_34 {dimension_numbers = #tpu.dot_dimension_numbers<[1], [0], [0], [1], [0, 0, 1, 1], [], []>} : vector<2x256xbf16>, vector<256x256xbf16>, vector<2x256xf32> -> vector<2x256xf32>
    %c1_35 = arith.constant 1 : index
    %c0_36 = arith.constant 0 : index
    %c0_37 = arith.constant 0 : index
    %47 = vector.load %arg4[%c1_35, %c0_36, %c0_37] : memref<2x1x256xf32, #tpu.memory_space<vmem>>, vector<1x1x256xf32>
    %48 = vector.shape_cast %47 : vector<1x1x256xf32> to vector<1x256xf32>
    %49 = vector.broadcast %48 : vector<1x256xf32> to vector<2x256xf32>
    %50 = arith.addf %46, %49 : vector<2x256xf32>
    %cst_38 = arith.constant 0.000000e+00 : f32
    %51 = vector.broadcast %cst_38 : f32 to vector<2x256xf32>
    %52 = arith.maximumf %50, %51 : vector<2x256xf32>
    %c1_39 = arith.constant 1 : index
    %c0_40 = arith.constant 0 : index
    %c0_41 = arith.constant 0 : index
    %53 = vector.load %arg5[%c1_39, %c0_40, %c0_41] : memref<2x1x256xbf16, #tpu.memory_space<vmem>>, vector<1x1x256xbf16>
    %54 = vector.shape_cast %53 : vector<1x1x256xbf16> to vector<1x256xbf16>
    %55 = arith.extf %54 : vector<1x256xbf16> to vector<1x256xf32>
    %56 = vector.broadcast %55 : vector<1x256xf32> to vector<2x256xf32>
    %57 = arith.mulf %52, %56 : vector<2x256xf32>
    %cst_42 = arith.constant dense<0.000000e+00> : vector<2xf32>
    %58 = vector.multi_reduction <add>, %57, %cst_42 [1] : vector<2x256xf32> to vector<2xf32>
    %59 = vector.shape_cast %58 : vector<2xf32> to vector<2x1xf32>
    %c1_43 = arith.constant 1 : index
    %60 = memref.load %arg6[%c1_43] : memref<2xf32, #tpu.memory_space<smem>>
    %61 = vector.broadcast %60 : f32 to vector<2x1xf32>
    %62 = arith.addf %59, %61 : vector<2x1xf32>
    %c1_44 = arith.constant 1 : index
    %c0_45 = arith.constant 0 : index
    %c0_46 = arith.constant 0 : index
    %63 = vector.load %arg7[%c1_44, %c0_45, %c0_46] : memref<2x2x1xf32, #tpu.memory_space<vmem>>, vector<1x2x1xf32>
    %64 = vector.shape_cast %63 : vector<1x2x1xf32> to vector<2x1xf32>
    %65 = vector.shape_cast %62 : vector<2x1xf32> to vector<1x2x1xf32>
    tpu.vector_store %arg7[%c1_44, %c0_45, %c0_46], %65 {strides = array<i32>} : memref<2x2x1xf32, #tpu.memory_space<vmem>>, vector<1x2x1xf32>,
    return
  }
}

</mosaic_0001>

<llo_original>
// kernel: critic_forward.1
$region0: #{critic_forward.1}
  #allocation0 [shape = 'u32[]', space=smem, size = 0x4, offset = 0x4, fixed_abs, tag = 'smem constant byte address 0x4 - core index']
  #allocation1 [shape = 'u32[144,128]{1,0:T(1,128)}', space=vmem, size = 0x12000, scoped, tag = 'internal scratch']
  %s0 = inlined_call_operand.vmem [shape: f32[2,5], index: 0, kind: input, shape index: {}]
  %s1 = inlined_call_operand.vmem [shape: bf16[2,5,256], index: 1, kind: input, shape index: {}]
  %s2 = inlined_call_operand.vmem [shape: f32[2,1,256], index: 2, kind: input, shape index: {}]
  %s3 = inlined_call_operand.hbm [shape: bf16[2,256,256], index: 3, kind: input, shape index: {}]
  %s4 = inlined_call_operand.vmem [shape: f32[2,1,256], index: 4, kind: input, shape index: {}]
  %s5 = inlined_call_operand.vmem [shape: bf16[2,1,256], index: 5, kind: input, shape index: {}]
  %s6 = inlined_call_operand.vmem [shape: f32[2], index: 6, kind: input, shape index: {}]
  %s7 = inlined_call_operand.vmem [shape: f32[2,2,1], index: 7, kind: output, shape index: {}]
  %s8 = sld [smem:[#allocation0]]
  $region46: #{critic_forward.1} parent=0
    _
  %s10 = ssub.s32 1, %s8
  %s11 = scalar_select 0, %s10, %s8
  $region1: #{critic_forward.1} parent=0
    #allocation2 [shape = 'u8[262144]{0}', space=vmem, size = 0x40000, scoped, tag = 'input window, operand 3, single buffered']
    #allocation3 [shape = 's32[1]{0}', space=sflag, size = 0x4, scoped, tag = 'scoped memory for critic_forward.1']
    #allocation4 [shape = 's32[1]{0}', space=sflag, size = 0x4, scoped, tag = 'scoped memory for critic_forward.1']
    #allocation5 [shape = 'u8[512]{0}', space=smem, size = 0x200, scoped, tag = 'input window, operand 6, single buffered']
    %12 = vsyncpa [#allocation3], 0
    %13 = vsyncpa [#allocation4], 0
    // Predicated region
    $region2: #{critic_forward.1} parent=1 // pred_check
      _
    $region3: #{critic_forward.1} parent=1 // pred_check_branch
      %15 = sbr.rel (0) target = $region5
    $region4: #{critic_forward.1} parent=1 // pred_region
      _
    $region5: #{critic_forward.1} parent=1 // pred_fallthru
      _
    // Predicated region
    $region6: #{critic_forward.1} parent=1 // pred_check
      _
    $region7: #{critic_forward.1} parent=1 // pred_check_branch
      %17 = sbr.rel (0) target = $region9
    $region8: #{critic_forward.1} parent=1 // pred_region
      _
    $region9: #{critic_forward.1} parent=1 // pred_fallthru
      _
    // Predicated region
    $region10: #{critic_forward.1} parent=1 // pred_check
      _
    $region11: #{critic_forward.1} parent=1 // pred_check_branch
      %19 = sbr.rel (0) target = $region13
    $region12: #{critic_forward.1} parent=1 // pred_region
      _
    $region13: #{critic_forward.1} parent=1 // pred_fallthru
      _
    // Predicated region
    $region14: #{critic_forward.1} parent=1 // pred_check
      _
    $region15: #{critic_forward.1} parent=1 // pred_check_branch
      %21 = sbr.rel (0) target = $region17
    $region16: #{critic_forward.1} parent=1 // pred_region
      %s23 = ssub.s32 8192, 8192
      %24 = vsyncadd [#allocation3], %s23
      %s25 = sshll.u32 [#allocation2], 4
      %s26 = int_to_ptr.vmem [resolvable:$true] %s25
      %31 = dma.hbm_to_vmem [thread:$0]  %s3, 8192, %s26, [#allocation3], 128, 128, 8
    $region17: #{critic_forward.1} parent=1 // pred_fallthru
      _
    // Predicated region
    $region18: #{critic_forward.1} parent=1 // pred_check
      _
    $region19: #{critic_forward.1} parent=1 // pred_check_branch
      %33 = sbr.rel (0) target = $region21
    $region20: #{critic_forward.1} parent=1 // pred_region
      _
    $region21: #{critic_forward.1} parent=1 // pred_fallthru
      _
    // Predicated region
    $region22: #{critic_forward.1} parent=1 // pred_check
      _
    $region23: #{critic_forward.1} parent=1 // pred_check_branch
      %35 = sbr.rel (0) target = $region25
    $region24: #{critic_forward.1} parent=1 // pred_region
      _
    $region25: #{critic_forward.1} parent=1 // pred_fallthru
      _
    // Predicated region
    $region26: #{critic_forward.1} parent=1 // pred_check
      _
    $region27: #{critic_forward.1} parent=1 // pred_check_branch
      %37 = sbr.rel (0) target = $region29
    $region28: #{critic_forward.1} parent=1 // pred_region
      %s39 = ssub.s32 16, 16
      %40 = vsyncadd [#allocation4], %s39
      %s42 = sshll.u32 %s6, 4
      %s43 = int_to_ptr.vmem [resolvable:$true] %s42
      %45 = dma.vmem_to_smem %s43, 16, [#allocation5], [#allocation4]
    $region29: #{critic_forward.1} parent=1 // pred_fallthru
      _
    // Predicated region
    $region30: #{critic_forward.1} parent=1 // pred_check
      _
    $region31: #{critic_forward.1} parent=1 // pred_check_branch
      %47 = sbr.rel (0) target = $region33
    $region32: #{critic_forward.1} parent=1 // pred_region
      %48 = dma.done [#allocation3], 8192
    $region33: #{critic_forward.1} parent=1 // pred_fallthru
      _
    // Predicated region
    $region34: #{critic_forward.1} parent=1 // pred_check
      _
    $region35: #{critic_forward.1} parent=1 // pred_check_branch
      %50 = sbr.rel (0) target = $region37
    $region36: #{critic_forward.1} parent=1 // pred_region
      %51 = dma.done [#allocation4], 16
    $region37: #{critic_forward.1} parent=1 // pred_fallthru
      _
    %52 = sfence
    %v54 = vld [vmem:[%s0] sm:$0x3]
    %v55 = vpack.c.bf16 %v54, %v54
    %v56 = vld [vmem:[%s1] sm:$0x77]
    %v57 = vld [vmem:[%s2] sm:$0x3]
    %v59 = vlaneseq
    %v60 = vshrl.u32 %v59, 7
    %v61 = vsub.s32 0, %v60
    %v62 = vrot.slane %v57, %v61
    %v63 = vlaneseq
    %v64 = vshrl.u32 %v63, 7
    %v65 = vsub.s32 1, %v64
    %v66 = vrot.slane %v57, %v65
    %v70 = vunpack.c.l.b16 %v56
    %v71 = vunpack.c.h.b16 %v56
    %v72 = vpack.c.b16 %v70, %v70
    %v73 = vpack.c.b16 %v71, %v71
    %vm74 = vcmask 39936
    %v76 = vsel %vm74, %v55, 0
    %vm78 = vcmask 1041408
    %vm79 = vcmask 1042432
    %v80 = vsel %vm78, 4294967295, 65535
    %v81 = vsel %vm79, %v80, 0
    %v83 = vand.u32 %v72, %v81
    %v86 = vand.u32 %v73, %v81
    %88 = vmatprep.subr.bf16.mxu0 %v86
    %89 = vmatpush1.bf16.msra.mxu0 %v83
    %90 = vmatprep.subr.bf16.mxu0 0
    %91 = vmatpush1.bf16.msra.mxu0 0
    %92 = vmatprep.subr.bf16.mxu0 0
    %93 = vmatpush1.bf16.msra.mxu0 0
    %94 = vmatprep.subr.bf16.mxu0 0
    %95 = vmatpush1.bf16.msra.mxu0 0
    %96 = vmatprep.subr.bf16.mxu0 0
    %97 = vmatpush1.bf16.msra.mxu0 0
    %98 = vmatprep.subr.bf16.mxu0 0
    %99 = vmatpush1.bf16.msra.mxu0 0
    %100 = vmatprep.subr.bf16.mxu0 0
    %101 = vmatpush1.bf16.msra.mxu0 0
    %102 = vmatprep.subr.bf16.mxu0 0
    %103 = vmatpush1.bf16.msra.mxu0 0
    %104 = vmatprep.subr.bf16.mxu0 0
    %105 = vmatpush1.bf16.msra.mxu0 0
    %106 = vmatprep.subr.bf16.mxu0 0
    %107 = vmatpush1.bf16.msra.mxu0 0
    %108 = vmatprep.subr.bf16.mxu0 0
    %109 = vmatpush1.bf16.msra.mxu0 0
    %110 = vmatprep.subr.bf16.mxu0 0
    %111 = vmatpush1.bf16.msra.mxu0 0
    %112 = vmatprep.subr.bf16.mxu0 0
    %113 = vmatpush1.bf16.msra.mxu0 0
    %114 = vmatprep.subr.bf16.mxu0 0
    %115 = vmatpush1.bf16.msra.mxu0 0
    %116 = vmatprep.subr.bf16.mxu0 0
    %117 = vmatpush1.bf16.msra.mxu0 0
    %118 = vmatprep.subr.bf16.mxu0 0
    %119 = vmatpush1.bf16.msra.mxu0 0
    %120 = vmatprep.mubr.bf16.mxu0 0
    %121 = vmatmul.mubr.bf16.gmra.mrb[0].mxu0 %v76
    %v122 = vpop.f32.mrb[0].mxu0
    %v123 = vadd.f32 %v62, %v122
    %v124 = vpop.f32.mrb[0].mxu0
    %v125 = vadd.f32 %v66, %v124
    %v126 = vpop.f32.mrb[0].mxu0
    %v127 = vpop.f32.mrb[0].mxu0
    %128 = vdwg.mxu0
    %v129 = vmax.f32 %v123, 0.0
    %v130 = vmax.f32 %v125, 0.0
    %v131 = vpack.c.bf16 %v129, %v129
    %v132 = vpack.c.bf16 %v130, %v130
    %v133 = vld [vmem:[#allocation2] sm:$0xff]
    %v134 = vld [vmem:[#allocation2 + $0x8] sm:$0xff]
    %v135 = vld [vmem:[#allocation2 + $0x10] sm:$0xff]
    %v136 = vld [vmem:[#allocation2 + $0x18] sm:$0xff]
    %v137 = vld [vmem:[#allocation2 + $0x20] sm:$0xff]
    %v138 = vld [vmem:[#allocation2 + $0x28] sm:$0xff]
    %v139 = vld [vmem:[#allocation2 + $0x30] sm:$0xff]
    %v140 = vld [vmem:[#allocation2 + $0x38] sm:$0xff]
    %v141 = vld [vmem:[#allocation2 + $0x40] sm:$0xff]
    %v142 = vld [vmem:[#allocation2 + $0x48] sm:$0xff]
    %v143 = vld [vmem:[#allocation2 + $0x50] sm:$0xff]
    %v144 = vld [vmem:[#allocation2 + $0x58] sm:$0xff]
    %v145 = vld [vmem:[#allocation2 + $0x60] sm:$0xff]
    %v146 = vld [vmem:[#allocation2 + $0x68] sm:$0xff]
    %v147 = vld [vmem:[#allocation2 + $0x70] sm:$0xff]
    %v148 = vld [vmem:[#allocation2 + $0x78] sm:$0xff]
    %v149 = vld [vmem:[#allocation2 + $0x80] sm:$0xff]
    %v150 = vld [vmem:[#allocation2 + $0x88] sm:$0xff]
    %v151 = vld [vmem:[#allocation2 + $0x90] sm:$0xff]
    %v152 = vld [vmem:[#allocation2 + $0x98] sm:$0xff]
    %v153 = vld [vmem:[#allocation2 + $0xa0] sm:$0xff]
    %v154 = vld [vmem:[#allocation2 + $0xa8] sm:$0xff]
    %v155 = vld [vmem:[#allocation2 + $0xb0] sm:$0xff]
    %v156 = vld [vmem:[#allocation2 + $0xb8] sm:$0xff]
    %v157 = vld [vmem:[#allocation2 + $0xc0] sm:$0xff]
    %v158 = vld [vmem:[#allocation2 + $0xc8] sm:$0xff]
    %v159 = vld [vmem:[#allocation2 + $0xd0] sm:$0xff]
    %v160 = vld [vmem:[#allocation2 + $0xd8] sm:$0xff]
    %v161 = vld [vmem:[#allocation2 + $0xe0] sm:$0xff]
    %v162 = vld [vmem:[#allocation2 + $0xe8] sm:$0xff]
    %v163 = vld [vmem:[#allocation2 + $0xf0] sm:$0xff]
    %v164 = vld [vmem:[#allocation2 + $0xf8] sm:$0xff]
    %v165 = vld [vmem:[%s4] sm:$0x3]
    %v167 = vlaneseq
    %v168 = vshrl.u32 %v167, 7
    %v169 = vsub.s32 0, %v168
    %v170 = vrot.slane %v165, %v169
    %v171 = vlaneseq
    %v172 = vshrl.u32 %v171, 7
    %v173 = vsub.s32 1, %v172
    %v174 = vrot.slane %v165, %v173
    %v209 = vunpack.c.l.b16 %v133
    %v210 = vunpack.c.h.b16 %v133
    %v211 = vunpack.c.l.b16 %v134
    %v212 = vunpack.c.h.b16 %v134
    %v213 = vunpack.c.l.b16 %v135
    %v214 = vunpack.c.h.b16 %v135
    %v215 = vunpack.c.l.b16 %v136
    %v216 = vunpack.c.h.b16 %v136
    %v217 = vunpack.c.l.b16 %v137
    %v218 = vunpack.c.h.b16 %v137
    %v219 = vunpack.c.l.b16 %v138
    %v220 = vunpack.c.h.b16 %v138
    %v221 = vunpack.c.l.b16 %v139
    %v222 = vunpack.c.h.b16 %v139
    %v223 = vunpack.c.l.b16 %v140
    %v224 = vunpack.c.h.b16 %v140
    %v225 = vunpack.c.l.b16 %v141
    %v226 = vunpack.c.h.b16 %v141
    %v227 = vunpack.c.l.b16 %v142
    %v228 = vunpack.c.h.b16 %v142
    %v229 = vunpack.c.l.b16 %v143
    %v230 = vunpack.c.h.b16 %v143
    %v231 = vunpack.c.l.b16 %v144
    %v232 = vunpack.c.h.b16 %v144
    %v233 = vunpack.c.l.b16 %v145
    %v234 = vunpack.c.h.b16 %v145
    %v235 = vunpack.c.l.b16 %v146
    %v236 = vunpack.c.h.b16 %v146
    %v237 = vunpack.c.l.b16 %v147
    %v238 = vunpack.c.h.b16 %v147
    %v239 = vunpack.c.l.b16 %v148
    %v240 = vunpack.c.h.b16 %v148
    %v241 = vunpack.c.l.b16 %v149
    %v242 = vunpack.c.h.b16 %v149
    %v243 = vunpack.c.l.b16 %v150
    %v244 = vunpack.c.h.b16 %v150
    %v245 = vunpack.c.l.b16 %v151
    %v246 = vunpack.c.h.b16 %v151
    %v247 = vunpack.c.l.b16 %v152
    %v248 = vunpack.c.h.b16 %v152
    %v249 = vunpack.c.l.b16 %v153
    %v250 = vunpack.c.h.b16 %v153
    %v251 = vunpack.c.l.b16 %v154
    %v252 = vunpack.c.h.b16 %v154
    %v253 = vunpack.c.l.b16 %v155
    %v254 = vunpack.c.h.b16 %v155
    %v255 = vunpack.c.l.b16 %v156
    %v256 = vunpack.c.h.b16 %v156
    %v257 = vunpack.c.l.b16 %v157
    %v258 = vunpack.c.h.b16 %v157
    %v259 = vunpack.c.l.b16 %v158
    %v260 = vunpack.c.h.b16 %v158
    %v261 = vunpack.c.l.b16 %v159
    %v262 = vunpack.c.h.b16 %v159
    %v263 = vunpack.c.l.b16 %v160
    %v264 = vunpack.c.h.b16 %v160
    %v265 = vunpack.c.l.b16 %v161
    %v266 = vunpack.c.h.b16 %v161
    %v267 = vunpack.c.l.b16 %v162
    %v268 = vunpack.c.h.b16 %v162
    %v269 = vunpack.c.l.b16 %v163
    %v270 = vunpack.c.h.b16 %v163
    %v271 = vunpack.c.l.b16 %v164
    %v272 = vunpack.c.h.b16 %v164
    %v273 = vpack.c.b16 %v211, %v209
    %v274 = vpack.c.b16 %v212, %v210
    %v275 = vpack.c.b16 %v215, %v213
    %v276 = vpack.c.b16 %v216, %v214
    %v277 = vpack.c.b16 %v219, %v217
    %v278 = vpack.c.b16 %v220, %v218
    %v279 = vpack.c.b16 %v223, %v221
    %v280 = vpack.c.b16 %v224, %v222
    %v281 = vpack.c.b16 %v227, %v225
    %v282 = vpack.c.b16 %v228, %v226
    %v283 = vpack.c.b16 %v231, %v229
    %v284 = vpack.c.b16 %v232, %v230
    %v285 = vpack.c.b16 %v235, %v233
    %v286 = vpack.c.b16 %v236, %v234
    %v287 = vpack.c.b16 %v239, %v237
    %v288 = vpack.c.b16 %v240, %v238
    %v289 = vpack.c.b16 %v243, %v241
    %v290 = vpack.c.b16 %v244, %v242
    %v291 = vpack.c.b16 %v247, %v245
    %v292 = vpack.c.b16 %v248, %v246
    %v293 = vpack.c.b16 %v251, %v249
    %v294 = vpack.c.b16 %v252, %v250
    %v295 = vpack.c.b16 %v255, %v253
    %v296 = vpack.c.b16 %v256, %v254
    %v297 = vpack.c.b16 %v259, %v257
    %v298 = vpack.c.b16 %v260, %v258
    %v299 = vpack.c.b16 %v263, %v261
    %v300 = vpack.c.b16 %v264, %v262
    %v301 = vpack.c.b16 %v267, %v265
    %v302 = vpack.c.b16 %v268, %v266
    %v303 = vpack.c.b16 %v271, %v269
    %v304 = vpack.c.b16 %v272, %v270
    %337 = vmatprep.subr.bf16.mxu0 %v274
    %338 = vmatpush1.bf16.msra.mxu0 %v273
    %339 = vmatprep.subr.bf16.mxu0 %v276
    %340 = vmatpush1.bf16.msra.mxu0 %v275
    %341 = vmatprep.subr.bf16.mxu0 %v278
    %342 = vmatpush1.bf16.msra.mxu0 %v277
    %343 = vmatprep.subr.bf16.mxu0 %v280
    %344 = vmatpush1.bf16.msra.mxu0 %v279
    %345 = vmatprep.subr.bf16.mxu0 %v282
    %346 = vmatpush1.bf16.msra.mxu0 %v281
    %347 = vmatprep.subr.bf16.mxu0 %v284
    %348 = vmatpush1.bf16.msra.mxu0 %v283
    %349 = vmatprep.subr.bf16.mxu0 %v286
    %350 = vmatpush1.bf16.msra.mxu0 %v285
    %351 = vmatprep.subr.bf16.mxu0 %v288
    %352 = vmatpush1.bf16.msra.mxu0 %v287
    %353 = vmatprep.subr.bf16.mxu0 %v290
    %354 = vmatpush1.bf16.msra.mxu0 %v289
    %355 = vmatprep.subr.bf16.mxu0 %v292
    %356 = vmatpush1.bf16.msra.mxu0 %v291
    %357 = vmatprep.subr.bf16.mxu0 %v294
    %358 = vmatpush1.bf16.msra.mxu0 %v293
    %359 = vmatprep.subr.bf16.mxu0 %v296
    %360 = vmatpush1.bf16.msra.mxu0 %v295
    %361 = vmatprep.subr.bf16.mxu0 %v298
    %362 = vmatpush1.bf16.msra.mxu0 %v297
    %363 = vmatprep.subr.bf16.mxu0 %v300
    %364 = vmatpush1.bf16.msra.mxu0 %v299
    %365 = vmatprep.subr.bf16.mxu0 %v302
    %366 = vmatpush1.bf16.msra.mxu0 %v301
    %367 = vmatprep.subr.bf16.mxu0 %v304
    %368 = vmatpush1.bf16.msra.mxu0 %v303
    %369 = vmatprep.mubr.bf16.mxu0 %v132
    %370 = vmatmul.mubr.bf16.gmra.mrb[0].mxu0 %v131
    %v371 = vpop.f32.mrb[0].mxu0
    %v372 = vadd.f32 %v170, %v371
    %v373 = vpop.f32.mrb[0].mxu0
    %v374 = vadd.f32 %v174, %v373
    %v375 = vpop.f32.mrb[0].mxu0
    %v376 = vpop.f32.mrb[0].mxu0
    %377 = vdwg.mxu0
    %v378 = vmax.f32 %v372, 0.0
    %v379 = vmax.f32 %v374, 0.0
    %v380 = vld [vmem:[%s5] sm:$0x3]
    %v381 = vunpack.c.l.bf16 %v380
    %v383 = vlaneseq
    %v384 = vshrl.u32 %v383, 7
    %v385 = vsub.s32 0, %v384
    %v386 = vrot.slane %v381, %v385
    %v387 = vlaneseq
    %v388 = vshrl.u32 %v387, 7
    %v389 = vsub.s32 2, %v388
    %v390 = vrot.slane %v381, %v389
    %v393 = vlaneseq
    %v394 = vshrl.u32 %v393, 7
    %v395 = vsub.s32 0, %v394
    %v396 = vrot.slane %v386, %v395
    %v397 = vlaneseq
    %v398 = vshrl.u32 %v397, 7
    %v399 = vsub.s32 0, %v398
    %v400 = vrot.slane %v390, %v399
    %v401 = vmul.f32 %v378, %v396
    %v402 = vmul.f32 %v379, %v400
    %v403 = vsel %vm78, %v401, 0.0
    %v404 = vsel %vm78, %v402, 0.0
    %v405 = vadd.f32 %v403, %v404
    %406 = vadd.xlane.f32.xlu0 %v405
    %v407 = vpop.xlane.xlu0 %406
    %s408 = sld [smem:[#allocation5]]
    %v409 = vstv %s408
    %v410 = vadd.f32 %v407, %v409
    %vm411 = vcmask 1024
    %412 = vst.msk [vmem:[%s7] sm:$0x3] %vm411, %v410
    %s413 = scalar_lea.vmem %s1, 8
    %v414 = vld [vmem:[%s413] sm:$0x77]
    %s415 = scalar_lea.vmem %s2, 2
    %v416 = vld [vmem:[%s415] sm:$0x3]
    %v418 = vlaneseq
    %v419 = vshrl.u32 %v418, 7
    %v420 = vsub.s32 0, %v419
    %v421 = vrot.slane %v416, %v420
    %v422 = vlaneseq
    %v423 = vshrl.u32 %v422, 7
    %v424 = vsub.s32 1, %v423
    %v425 = vrot.slane %v416, %v424
    %v429 = vunpack.c.l.b16 %v414
    %v430 = vunpack.c.h.b16 %v414
    %v431 = vpack.c.b16 %v429, %v429
    %v432 = vpack.c.b16 %v430, %v430
    %v434 = vand.u32 %v431, %v81
    %v437 = vand.u32 %v432, %v81
    %439 = vmatprep.subr.bf16.mxu0 %v437
    %440 = vmatpush1.bf16.msra.mxu0 %v434
    %441 = vmatprep.subr.bf16.mxu0 0
    %442 = vmatpush1.bf16.msra.mxu0 0
    %443 = vmatprep.subr.bf16.mxu0 0
    %444 = vmatpush1.bf16.msra.mxu0 0
    %445 = vmatprep.subr.bf16.mxu0 0
    %446 = vmatpush1.bf16.msra.mxu0 0
    %447 = vmatprep.subr.bf16.mxu0 0
    %448 = vmatpush1.bf16.msra.mxu0 0
    %449 = vmatprep.subr.bf16.mxu0 0
    %450 = vmatpush1.bf16.msra.mxu0 0
    %451 = vmatprep.subr.bf16.mxu0 0
    %452 = vmatpush1.bf16.msra.mxu0 0
    %453 = vmatprep.subr.bf16.mxu0 0
    %454 = vmatpush1.bf16.msra.mxu0 0
    %455 = vmatprep.subr.bf16.mxu0 0
    %456 = vmatpush1.bf16.msra.mxu0 0
    %457 = vmatprep.subr.bf16.mxu0 0
    %458 = vmatpush1.bf16.msra.mxu0 0
    %459 = vmatprep.subr.bf16.mxu0 0
    %460 = vmatpush1.bf16.msra.mxu0 0
    %461 = vmatprep.subr.bf16.mxu0 0
    %462 = vmatpush1.bf16.msra.mxu0 0
    %463 = vmatprep.subr.bf16.mxu0 0
    %464 = vmatpush1.bf16.msra.mxu0 0
    %465 = vmatprep.subr.bf16.mxu0 0
    %466 = vmatpush1.bf16.msra.mxu0 0
    %467 = vmatprep.subr.bf16.mxu0 0
    %468 = vmatpush1.bf16.msra.mxu0 0
    %469 = vmatprep.subr.bf16.mxu0 0
    %470 = vmatpush1.bf16.msra.mxu0 0
    %471 = vmatprep.mubr.bf16.mxu0 0
    %472 = vmatmul.mubr.bf16.gmra.mrb[0].mxu0 %v76
    %v473 = vpop.f32.mrb[0].mxu0
    %v474 = vadd.f32 %v421, %v473
    %v475 = vpop.f32.mrb[0].mxu0
    %v476 = vadd.f32 %v425, %v475
    %v477 = vpop.f32.mrb[0].mxu0
    %v478 = vpop.f32.mrb[0].mxu0
    %479 = vdwg.mxu0
    %v480 = vmax.f32 %v474, 0.0
    %v481 = vmax.f32 %v476, 0.0
    %v482 = vpack.c.bf16 %v480, %v480
    %v483 = vpack.c.bf16 %v481, %v481
    %s484 = scalar_lea.vmem [#allocation2], 256
    %v485 = vld [vmem:[%s484] sm:$0xff]
    %v486 = vld [vmem:[%s484 + $0x8] sm:$0xff]
    %v487 = vld [vmem:[%s484 + $0x10] sm:$0xff]
    %v488 = vld [vmem:[%s484 + $0x18] sm:$0xff]
    %v489 = vld [vmem:[%s484 + $0x20] sm:$0xff]
    %v490 = vld [vmem:[%s484 + $0x28] sm:$0xff]
    %v491 = vld [vmem:[%s484 + $0x30] sm:$0xff]
    %v492 = vld [vmem:[%s484 + $0x38] sm:$0xff]
    %v493 = vld [vmem:[%s484 + $0x40] sm:$0xff]
    %v494 = vld [vmem:[%s484 + $0x48] sm:$0xff]
    %v495 = vld [vmem:[%s484 + $0x50] sm:$0xff]
    %v496 = vld [vmem:[%s484 + $0x58] sm:$0xff]
    %v497 = vld [vmem:[%s484 + $0x60] sm:$0xff]
    %v498 = vld [vmem:[%s484 + $0x68] sm:$0xff]
    %v499 = vld [vmem:[%s484 + $0x70] sm:$0xff]
    %v500 = vld [vmem:[%s484 + $0x78] sm:$0xff]
    %v501 = vld [vmem:[%s484 + $0x80] sm:$0xff]
    %v502 = vld [vmem:[%s484 + $0x88] sm:$0xff]
    %v503 = vld [vmem:[%s484 + $0x90] sm:$0xff]
    %v504 = vld [vmem:[%s484 + $0x98] sm:$0xff]
    %v505 = vld [vmem:[%s484 + $0xa0] sm:$0xff]
    %v506 = vld [vmem:[%s484 + $0xa8] sm:$0xff]
    %v507 = vld [vmem:[%s484 + $0xb0] sm:$0xff]
    %v508 = vld [vmem:[%s484 + $0xb8] sm:$0xff]
    %v509 = vld [vmem:[%s484 + $0xc0] sm:$0xff]
    %v510 = vld [vmem:[%s484 + $0xc8] sm:$0xff]
    %v511 = vld [vmem:[%s484 + $0xd0] sm:$0xff]
    %v512 = vld [vmem:[%s484 + $0xd8] sm:$0xff]
    %v513 = vld [vmem:[%s484 + $0xe0] sm:$0xff]
    %v514 = vld [vmem:[%s484 + $0xe8] sm:$0xff]
    %v515 = vld [vmem:[%s484 + $0xf0] sm:$0xff]
    %v516 = vld [vmem:[%s484 + $0xf8] sm:$0xff]
    %s517 = scalar_lea.vmem %s4, 2
    %v518 = vld [vmem:[%s517] sm:$0x3]
    %v520 = vlaneseq
    %v521 = vshrl.u32 %v520, 7
    %v522 = vsub.s32 0, %v521
    %v523 = vrot.slane %v518, %v522
    %v524 = vlaneseq
    %v525 = vshrl.u32 %v524, 7
    %v526 = vsub.s32 1, %v525
    %v527 = vrot.slane %v518, %v526
    %v562 = vunpack.c.l.b16 %v485
    %v563 = vunpack.c.h.b16 %v485
    %v564 = vunpack.c.l.b16 %v486
    %v565 = vunpack.c.h.b16 %v486
    %v566 = vunpack.c.l.b16 %v487
    %v567 = vunpack.c.h.b16 %v487
    %v568 = vunpack.c.l.b16 %v488
    %v569 = vunpack.c.h.b16 %v488
    %v570 = vunpack.c.l.b16 %v489
    %v571 = vunpack.c.h.b16 %v489
    %v572 = vunpack.c.l.b16 %v490
    %v573 = vunpack.c.h.b16 %v490
    %v574 = vunpack.c.l.b16 %v491
    %v575 = vunpack.c.h.b16 %v491
    %v576 = vunpack.c.l.b16 %v492
    %v577 = vunpack.c.h.b16 %v492
    %v578 = vunpack.c.l.b16 %v493
    %v579 = vunpack.c.h.b16 %v493
    %v580 = vunpack.c.l.b16 %v494
    %v581 = vunpack.c.h.b16 %v494
    %v582 = vunpack.c.l.b16 %v495
    %v583 = vunpack.c.h.b16 %v495
    %v584 = vunpack.c.l.b16 %v496
    %v585 = vunpack.c.h.b16 %v496
    %v586 = vunpack.c.l.b16 %v497
    %v587 = vunpack.c.h.b16 %v497
    %v588 = vunpack.c.l.b16 %v498
    %v589 = vunpack.c.h.b16 %v498
    %v590 = vunpack.c.l.b16 %v499
    %v591 = vunpack.c.h.b16 %v499
    %v592 = vunpack.c.l.b16 %v500
    %v593 = vunpack.c.h.b16 %v500
    %v594 = vunpack.c.l.b16 %v501
    %v595 = vunpack.c.h.b16 %v501
    %v596 = vunpack.c.l.b16 %v502
    %v597 = vunpack.c.h.b16 %v502
    %v598 = vunpack.c.l.b16 %v503
    %v599 = vunpack.c.h.b16 %v503
    %v600 = vunpack.c.l.b16 %v504
    %v601 = vunpack.c.h.b16 %v504
    %v602 = vunpack.c.l.b16 %v505
    %v603 = vunpack.c.h.b16 %v505
    %v604 = vunpack.c.l.b16 %v506
    %v605 = vunpack.c.h.b16 %v506
    %v606 = vunpack.c.l.b16 %v507
    %v607 = vunpack.c.h.b16 %v507
    %v608 = vunpack.c.l.b16 %v508
    %v609 = vunpack.c.h.b16 %v508
    %v610 = vunpack.c.l.b16 %v509
    %v611 = vunpack.c.h.b16 %v509
    %v612 = vunpack.c.l.b16 %v510
    %v613 = vunpack.c.h.b16 %v510
    %v614 = vunpack.c.l.b16 %v511
    %v615 = vunpack.c.h.b16 %v511
    %v616 = vunpack.c.l.b16 %v512
    %v617 = vunpack.c.h.b16 %v512
    %v618 = vunpack.c.l.b16 %v513
    %v619 = vunpack.c.h.b16 %v513
    %v620 = vunpack.c.l.b16 %v514
    %v621 = vunpack.c.h.b16 %v514
    %v622 = vunpack.c.l.b16 %v515
    %v623 = vunpack.c.h.b16 %v515
    %v624 = vunpack.c.l.b16 %v516
    %v625 = vunpack.c.h.b16 %v516
    %v626 = vpack.c.b16 %v564, %v562
    %v627 = vpack.c.b16 %v565, %v563
    %v628 = vpack.c.b16 %v568, %v566
    %v629 = vpack.c.b16 %v569, %v567
    %v630 = vpack.c.b16 %v572, %v570
    %v631 = vpack.c.b16 %v573, %v571
    %v632 = vpack.c.b16 %v576, %v574
    %v633 = vpack.c.b16 %v577, %v575
    %v634 = vpack.c.b16 %v580, %v578
    %v635 = vpack.c.b16 %v581, %v579
    %v636 = vpack.c.b16 %v584, %v582
    %v637 = vpack.c.b16 %v585, %v583
    %v638 = vpack.c.b16 %v588, %v586
    %v639 = vpack.c.b16 %v589, %v587
    %v640 = vpack.c.b16 %v592, %v590
    %v641 = vpack.c.b16 %v593, %v591
    %v642 = vpack.c.b16 %v596, %v594
    %v643 = vpack.c.b16 %v597, %v595
    %v644 = vpack.c.b16 %v600, %v598
    %v645 = vpack.c.b16 %v601, %v599
    %v646 = vpack.c.b16 %v604, %v602
    %v647 = vpack.c.b16 %v605, %v603
    %v648 = vpack.c.b16 %v608, %v606
    %v649 = vpack.c.b16 %v609, %v607
    %v650 = vpack.c.b16 %v612, %v610
    %v651 = vpack.c.b16 %v613, %v611
    %v652 = vpack.c.b16 %v616, %v614
    %v653 = vpack.c.b16 %v617, %v615
    %v654 = vpack.c.b16 %v620, %v618
    %v655 = vpack.c.b16 %v621, %v619
    %v656 = vpack.c.b16 %v624, %v622
    %v657 = vpack.c.b16 %v625, %v623
    %690 = vmatprep.subr.bf16.mxu0 %v627
    %691 = vmatpush1.bf16.msra.mxu0 %v626
    %692 = vmatprep.subr.bf16.mxu0 %v629
    %693 = vmatpush1.bf16.msra.mxu0 %v628
    %694 = vmatprep.subr.bf16.mxu0 %v631
    %695 = vmatpush1.bf16.msra.mxu0 %v630
    %696 = vmatprep.subr.bf16.mxu0 %v633
    %697 = vmatpush1.bf16.msra.mxu0 %v632
    %698 = vmatprep.subr.bf16.mxu0 %v635
    %699 = vmatpush1.bf16.msra.mxu0 %v634
    %700 = vmatprep.subr.bf16.mxu0 %v637
    %701 = vmatpush1.bf16.msra.mxu0 %v636
    %702 = vmatprep.subr.bf16.mxu0 %v639
    %703 = vmatpush1.bf16.msra.mxu0 %v638
    %704 = vmatprep.subr.bf16.mxu0 %v641
    %705 = vmatpush1.bf16.msra.mxu0 %v640
    %706 = vmatprep.subr.bf16.mxu0 %v643
    %707 = vmatpush1.bf16.msra.mxu0 %v642
    %708 = vmatprep.subr.bf16.mxu0 %v645
    %709 = vmatpush1.bf16.msra.mxu0 %v644
    %710 = vmatprep.subr.bf16.mxu0 %v647
    %711 = vmatpush1.bf16.msra.mxu0 %v646
    %712 = vmatprep.subr.bf16.mxu0 %v649
    %713 = vmatpush1.bf16.msra.mxu0 %v648
    %714 = vmatprep.subr.bf16.mxu0 %v651
    %715 = vmatpush1.bf16.msra.mxu0 %v650
    %716 = vmatprep.subr.bf16.mxu0 %v653
    %717 = vmatpush1.bf16.msra.mxu0 %v652
    %718 = vmatprep.subr.bf16.mxu0 %v655
    %719 = vmatpush1.bf16.msra.mxu0 %v654
    %720 = vmatprep.subr.bf16.mxu0 %v657
    %721 = vmatpush1.bf16.msra.mxu0 %v656
    %722 = vmatprep.mubr.bf16.mxu0 %v483
    %723 = vmatmul.mubr.bf16.gmra.mrb[0].mxu0 %v482
    %v724 = vpop.f32.mrb[0].mxu0
    %v725 = vadd.f32 %v523, %v724
    %v726 = vpop.f32.mrb[0].mxu0
    %v727 = vadd.f32 %v527, %v726
    %v728 = vpop.f32.mrb[0].mxu0
    %v729 = vpop.f32.mrb[0].mxu0
    %730 = vdwg.mxu0
    %v731 = vmax.f32 %v725, 0.0
    %v732 = vmax.f32 %v727, 0.0
    %s733 = scalar_lea.vmem %s5, 2
    %v734 = vld [vmem:[%s733] sm:$0x3]
    %v735 = vunpack.c.l.bf16 %v734
    %v737 = vlaneseq
    %v738 = vshrl.u32 %v737, 7
    %v739 = vsub.s32 0, %v738
    %v740 = vrot.slane %v735, %v739
    %v741 = vlaneseq
    %v742 = vshrl.u32 %v741, 7
    %v743 = vsub.s32 2, %v742
    %v744 = vrot.slane %v735, %v743
    %v747 = vlaneseq
    %v748 = vshrl.u32 %v747, 7
    %v749 = vsub.s32 0, %v748
    %v750 = vrot.slane %v740, %v749
    %v751 = vlaneseq
    %v752 = vshrl.u32 %v751, 7
    %v753 = vsub.s32 0, %v752
    %v754 = vrot.slane %v744, %v753
    %v755 = vmul.f32 %v731, %v750
    %v756 = vmul.f32 %v732, %v754
    %v757 = vsel %vm78, %v755, 0.0
    %v758 = vsel %vm78, %v756, 0.0
    %v759 = vadd.f32 %v757, %v758
    %760 = vadd.xlane.f32.xlu0 %v759
    %v761 = vpop.xlane.xlu0 %760
    %s762 = sld [smem:[#allocation5 + $0x1]]
    %v763 = vstv %s762
    %v764 = vadd.f32 %v761, %v763
    %s765 = scalar_lea.vmem %s7, 2
    %766 = vst.msk [vmem:[%s765] sm:$0x3] %vm411, %v764
    // Predicated region
    $region38: #{critic_forward.1} parent=1 // pred_check
      _
    $region39: #{critic_forward.1} parent=1 // pred_check_branch
      %768 = sbr.rel (0) target = $region41
    $region40: #{critic_forward.1} parent=1 // pred_region
      _
    $region41: #{critic_forward.1} parent=1 // pred_fallthru
      _
    // Predicated region
    $region42: #{critic_forward.1} parent=1 // pred_check
      _
    $region43: #{critic_forward.1} parent=1 // pred_check_branch
      %770 = sbr.rel (0) target = $region45
    $region44: #{critic_forward.1} parent=1 // pred_region
      _
    $region45: #{critic_forward.1} parent=1 // pred_fallthru
      _
    %771 = vsyncpa [#allocation3], 1
    %772 = vsyncpa [#allocation4], 1

</llo_original>
